<compile_context>
chip_gen: v7x
topology: tpu7x:2x2x1
jax: 0.10.0
libtpu: 0.0.40
codegen_flags: <defaults>
</compile_context>

<pallas_src>
import jax
import jax.numpy as jnp
from jax.experimental import pallas as pl
from jax.experimental.pallas import tpu as pltpu

HIDDEN = 64          # hidden_dim (forward hard-codes reshape(..., 64))
INPUT_SIZE = 32      # input_size of the module
TILE_ROWS = 8192     # batch tile (rows per grid step)
VMEM_LIMIT = 48 * 1024 * 1024   # explicit scoped-VMEM limit (safe on v5e/v6e/v7x)


def _sigmoid1(x):
    """sigmoid(x) == 0.5*(tanh(x/2)+1): exactly one EUP op per element."""
    return 0.5 * (jnp.tanh(0.5 * x) + 1.0)


def lstm2_kernel(x_ref, w0_ref, b0_ref, w1_ref, b1_ref, hc_ref):
    """Two stacked LSTM-cell steps (zero initial state) on one batch tile.

    Weights hold only the live gate columns in order [i | g | o] (3*H lanes).
    Output ref is (2, TB, H): plane 0 = h1, plane 1 = c1 (contiguous planes,
    so the wrapper never needs a strided split).
    """
    H = HIDDEN

    # x arrives f32 from HBM; cast to bf16 in-kernel (free VPU filler) so the
    # MXU runs bf16 with f32 accumulation and no extra wrapper pass is needed.
    x = x_ref[...].astype(jnp.bfloat16)

    # ---- layer 0 ----  gates = x @ W_ih_l0[:, igo]^T + (b_ih_l0 + b_hh_l0)[igo]
    g0 = jnp.dot(x, w0_ref[...], preferred_element_type=jnp.float32) + b0_ref[...]
    i0 = _sigmoid1(g0[:, 0 * H:1 * H])
    gg0 = jnp.tanh(g0[:, 1 * H:2 * H])
    o0 = _sigmoid1(g0[:, 2 * H:3 * H])
    c0 = i0 * gg0                       # f * c_prev == 0 exactly (c_prev == 0)
    h0 = o0 * jnp.tanh(c0)

    # ---- layer 1 ----  input is layer-0 output h0; its own h_prev/c_prev == 0
    g1 = jnp.dot(h0.astype(jnp.bfloat16), w1_ref[...],
                 preferred_element_type=jnp.float32) + b1_ref[...]
    i1 = _sigmoid1(g1[:, 0 * H:1 * H])
    gg1 = jnp.tanh(g1[:, 1 * H:2 * H])
    o1 = _sigmoid1(g1[:, 2 * H:3 * H])
    c1 = i1 * gg1
    h1 = o1 * jnp.tanh(c1)

    # Two contiguous output planes; 64-lane stores only cost vst slots, which
    # have ample slack in this DMA-bound kernel.
    hc_ref[0, :, :] = h1.astype(hc_ref.dtype)
    hc_ref[1, :, :] = c1.astype(hc_ref.dtype)


def init_lstm_params(key, input_size=INPUT_SIZE, hidden=HIDDEN):
    """Deterministic init matching nn.LSTM shapes: U(-1/sqrt(H), 1/sqrt(H))."""
    k = 1.0 / jnp.sqrt(jnp.float32(hidden))
    names_shapes = [
        ("weight_ih_l0", (4 * hidden, input_size)),
        ("weight_hh_l0", (4 * hidden, hidden)),     # unused: h_prev == 0
        ("bias_ih_l0",   (4 * hidden,)),
        ("bias_hh_l0",   (4 * hidden,)),
        ("weight_ih_l1", (4 * hidden, hidden)),
        ("weight_hh_l1", (4 * hidden, hidden)),     # unused: h_prev == 0
        ("bias_ih_l1",   (4 * hidden,)),
        ("bias_hh_l1",   (4 * hidden,)),
    ]
    keys = jax.random.split(key, len(names_shapes))
    return {n: jax.random.uniform(kk, s, jnp.float32, -k, k)
            for kk, (n, s) in zip(keys, names_shapes)}


def _keep_igo_rows(w, H):
    """Keep rows of the live gates [i, g, o] from a (4H, D) PyTorch weight."""
    return jnp.concatenate([w[0 * H:1 * H], w[2 * H:3 * H], w[3 * H:4 * H]], axis=0)


def _keep_igo_vec(b, H):
    return jnp.concatenate([b[0 * H:1 * H], b[2 * H:3 * H], b[3 * H:4 * H]], axis=0)


def lstm_forward(x, params, *, tile_rows=TILE_ROWS):
    """Equivalent of LSTM.forward(x): returns (h, c) each of shape (-1, 1, 64)."""
    H = HIDDEN
    xb = x.reshape(-1, INPUT_SIZE).astype(jnp.float32)   # (B, input_size), f32
    B = xb.shape[0]

    # Drop dead forget-gate columns, fold the two biases, pre-transpose the
    # weights so the in-kernel matmul output is lane-dense (3H contiguous lanes).
    w0 = _keep_igo_rows(params["weight_ih_l0"], H).T.astype(jnp.bfloat16)   # (D, 3H)
    w1 = _keep_igo_rows(params["weight_ih_l1"], H).T.astype(jnp.bfloat16)   # (H, 3H)
    b0 = _keep_igo_vec(params["bias_ih_l0"] + params["bias_hh_l0"], H
                       ).reshape(1, 3 * H).astype(jnp.float32)
    b1 = _keep_igo_vec(params["bias_ih_l1"] + params["bias_hh_l1"], H
                       ).reshape(1, 3 * H).astype(jnp.float32)

    # Batch tiling: TB a multiple of 16 (bf16 sublane packing); pad B up to a
    # whole number of tiles only when needed so every block_shape is valid.
    if B >= tile_rows:
        TB = tile_rows
    else:
        TB = max(16, ((B + 15) // 16) * 16)
    n_tiles = pl.cdiv(B, TB)
    B_pad = n_tiles * TB
    if B_pad != B:
        xb = jnp.pad(xb, ((0, B_pad - B), (0, 0)))

    flops = 2 * B_pad * (INPUT_SIZE + H) * 3 * H          # both layers, live gates
    transcendentals = 8 * H * B_pad                       # 4 tanh per layer per row
    bytes_accessed = (xb.size * 4                         # x f32 read
                      + w0.size * 2 + w1.size * 2         # bf16 weights
                      + b0.size * 4 + b1.size * 4
                      + 2 * B_pad * H * 4)                # h,c f32 store

    hc = pl.pallas_call(
        lstm2_kernel,
        out_shape=jax.ShapeDtypeStruct((2, B_pad, H), jnp.float32),
        grid=(n_tiles,),
        in_specs=[
            pl.BlockSpec((TB, INPUT_SIZE), lambda i: (i, 0)),       # x tile (f32)
            pl.BlockSpec((INPUT_SIZE, 3 * H), lambda i: (0, 0)),    # w0 resident
            pl.BlockSpec((1, 3 * H), lambda i: (0, 0)),             # b0 resident
            pl.BlockSpec((H, 3 * H), lambda i: (0, 0)),             # w1 resident
            pl.BlockSpec((1, 3 * H), lambda i: (0, 0)),             # b1 resident
        ],
        out_specs=pl.BlockSpec((2, TB, H), lambda i: (0, i, 0)),    # [h; c] planes
        compiler_params=pltpu.CompilerParams(
            dimension_semantics=("parallel",),
            vmem_limit_bytes=VMEM_LIMIT),
        cost_estimate=pl.CostEstimate(flops=flops,
                                      transcendentals=transcendentals,
                                      bytes_accessed=bytes_accessed),
    )(xb, w0, b0, w1, b1)

    # Plane index + contiguous prefix slice + reshape: no strided re-read of hc.
    h = hc[0, :B].reshape(-1, 1, H)
    c = hc[1, :B].reshape(-1, 1, H)
    return h, c


def lstm_forward_ref(x, params):
    """Pure-JAX f32 reference of the same forward pass (for verification)."""
    H = HIDDEN
    xb = x.reshape(-1, INPUT_SIZE).astype(jnp.float32)

    def cell(inp, w_ih, b_ih, b_hh):
        g = inp @ w_ih.T + b_ih + b_hh
        i = jax.nn.sigmoid(g[:, 0 * H:1 * H])
        gg = jnp.tanh(g[:, 2 * H:3 * H])
        o = jax.nn.sigmoid(g[:, 3 * H:4 * H])
        c = i * gg
        return o * jnp.tanh(c), c

    h0, _ = cell(xb, params["weight_ih_l0"], params["bias_ih_l0"], params["bias_hh_l0"])
    h1, c1 = cell(h0, params["weight_ih_l1"], params["bias_ih_l1"], params["bias_hh_l1"])
    return h1.reshape(-1, 1, H), c1.reshape(-1, 1, H)


if __name__ == "__main__":
    key = jax.random.PRNGKey(0)
    kx, kp = jax.random.split(key)

    # Small input: (2, 4, 32) -> module reshapes to (8, 1, 32) internally.
    x = jax.random.normal(kx, (2, 4, INPUT_SIZE), jnp.float32)
    params = init_lstm_params(kp)

    h, c = lstm_forward(x, params)
    h = jax.block_until_ready(h)
    c = jax.block_until_ready(c)

    h_ref, c_ref = lstm_forward_ref(x, params)
    assert h.shape == (8, 1, 64) and c.shape == (8, 1, 64)
    # bf16 MXU inputs -> compare against the f32 reference with a looser tol.
    assert jnp.allclose(h, h_ref, atol=2e-2, rtol=2e-2)
    assert jnp.allclose(c, c_ref, atol=2e-2, rtol=2e-2)

    print("KERNEL_OK")
</pallas_src>

<mosaic_0001>
module attributes {stable_mosaic.version = 11 : i64} {
  func.func @lstm2_kernel(%arg0: i32, %arg1: memref<16x32xf32, #tpu.memory_space<vmem>>, %arg2: memref<32x192xbf16, #tpu.memory_space<vmem>>, %arg3: memref<1x192xf32, #tpu.memory_space<vmem>>, %arg4: memref<64x192xbf16, #tpu.memory_space<vmem>>, %arg5: memref<1x192xf32, #tpu.memory_space<vmem>>, %arg6: memref<2x16x64xf32, #tpu.memory_space<vmem>>) attributes {dimension_semantics = [#tpu.dimension_semantics<parallel>], iteration_bounds = array<i64: 1>, scalar_prefetch = 0 : i64, scratch_operands = 0 : i64, tpu.core_type = #tpu.core_type<tc>, window_params = [{transform_indices = @transform_0, window_bounds = array<i64: 16, 32>}, {pipeline_mode = #tpu.pipeline_mode<synchronous>, transform_indices = @transform_1, window_bounds = array<i64: 32, 192>}, {pipeline_mode = #tpu.pipeline_mode<synchronous>, transform_indices = @transform_2, window_bounds = array<i64: 1, 192>}, {pipeline_mode = #tpu.pipeline_mode<synchronous>, transform_indices = @transform_3, window_bounds = array<i64: 64, 192>}, {pipeline_mode = #tpu.pipeline_mode<synchronous>, transform_indices = @transform_4, window_bounds = array<i64: 1, 192>}, {transform_indices = @transform_5, window_bounds = array<i64: 2, 16, 64>}]} {
    %c0 = arith.constant 0 : index
    %c0_0 = arith.constant 0 : index
    %0 = vector.load %arg1[%c0, %c0_0] : memref<16x32xf32, #tpu.memory_space<vmem>>, vector<16x32xf32>
    %1 = arith.truncf %0 : vector<16x32xf32> to vector<16x32xbf16>
    %c0_1 = arith.constant 0 : index
    %c0_2 = arith.constant 0 : index
    %2 = vector.load %arg2[%c0_1, %c0_2] : memref<32x192xbf16, #tpu.memory_space<vmem>>, vector<32x192xbf16>
    %cst = arith.constant dense<0.000000e+00> : vector<16x192xf32>
    %3 = tpu.matmul %1, %2, %cst {dimension_numbers = #tpu.dot_dimension_numbers<[1], [0], [0], [1], [0, 0, 1, 1], [], []>} : vector<16x32xbf16>, vector<32x192xbf16>, vector<16x192xf32> -> vector<16x192xf32>
    %c0_3 = arith.constant 0 : index
    %c0_4 = arith.constant 0 : index
    %4 = vector.load %arg3[%c0_3, %c0_4] : memref<1x192xf32, #tpu.memory_space<vmem>>, vector<1x192xf32>
    %5 = vector.broadcast %4 : vector<1x192xf32> to vector<16x192xf32>
    %6 = arith.addf %3, %5 : vector<16x192xf32>
    %7 = vector.extract_strided_slice %6 {offsets = [0, 0], sizes = [16, 64], strides = [1, 1]} : vector<16x192xf32> to vector<16x64xf32>
    %cst_5 = arith.constant 5.000000e-01 : f32
    %8 = vector.broadcast %cst_5 : f32 to vector<16x64xf32>
    %9 = arith.mulf %8, %7 : vector<16x64xf32>
    %10 = math.tanh %9 : vector<16x64xf32>
    %cst_6 = arith.constant 1.000000e+00 : f32
    %11 = vector.broadcast %cst_6 : f32 to vector<16x64xf32>
    %12 = arith.addf %10, %11 : vector<16x64xf32>
    %cst_7 = arith.constant 5.000000e-01 : f32
    %13 = vector.broadcast %cst_7 : f32 to vector<16x64xf32>
    %14 = arith.mulf %13, %12 : vector<16x64xf32>
    %15 = vector.extract_strided_slice %6 {offsets = [0, 64], sizes = [16, 64], strides = [1, 1]} : vector<16x192xf32> to vector<16x64xf32>
    %16 = math.tanh %15 : vector<16x64xf32>
    %17 = vector.extract_strided_slice %6 {offsets = [0, 128], sizes = [16, 64], strides = [1, 1]} : vector<16x192xf32> to vector<16x64xf32>
    %cst_8 = arith.constant 5.000000e-01 : f32
    %18 = vector.broadcast %cst_8 : f32 to vector<16x64xf32>
    %19 = arith.mulf %18, %17 : vector<16x64xf32>
    %20 = math.tanh %19 : vector<16x64xf32>
    %cst_9 = arith.constant 1.000000e+00 : f32
    %21 = vector.broadcast %cst_9 : f32 to vector<16x64xf32>
    %22 = arith.addf %20, %21 : vector<16x64xf32>
    %cst_10 = arith.constant 5.000000e-01 : f32
    %23 = vector.broadcast %cst_10 : f32 to vector<16x64xf32>
    %24 = arith.mulf %23, %22 : vector<16x64xf32>
    %25 = arith.mulf %14, %16 : vector<16x64xf32>
    %26 = math.tanh %25 : vector<16x64xf32>
    %27 = arith.mulf %24, %26 : vector<16x64xf32>
    %28 = arith.truncf %27 : vector<16x64xf32> to vector<16x64xbf16>
    %c0_11 = arith.constant 0 : index
    %c0_12 = arith.constant 0 : index
    %29 = vector.load %arg4[%c0_11, %c0_12] : memref<64x192xbf16, #tpu.memory_space<vmem>>, vector<64x192xbf16>
    %cst_13 = arith.constant dense<0.000000e+00> : vector<16x192xf32>
    %30 = tpu.matmul %28, %29, %cst_13 {dimension_numbers = #tpu.dot_dimension_numbers<[1], [0], [0], [1], [0, 0, 1, 1], [], []>} : vector<16x64xbf16>, vector<64x192xbf16>, vector<16x192xf32> -> vector<16x192xf32>
    %c0_14 = arith.constant 0 : index
    %c0_15 = arith.constant 0 : index
    %31 = vector.load %arg5[%c0_14, %c0_15] : memref<1x192xf32, #tpu.memory_space<vmem>>, vector<1x192xf32>
    %32 = vector.broadcast %31 : vector<1x192xf32> to vector<16x192xf32>
    %33 = arith.addf %30, %32 : vector<16x192xf32>
    %34 = vector.extract_strided_slice %33 {offsets = [0, 0], sizes = [16, 64], strides = [1, 1]} : vector<16x192xf32> to vector<16x64xf32>
    %cst_16 = arith.constant 5.000000e-01 : f32
    %35 = vector.broadcast %cst_16 : f32 to vector<16x64xf32>
    %36 = arith.mulf %35, %34 : vector<16x64xf32>
    %37 = math.tanh %36 : vector<16x64xf32>
    %cst_17 = arith.constant 1.000000e+00 : f32
    %38 = vector.broadcast %cst_17 : f32 to vector<16x64xf32>
    %39 = arith.addf %37, %38 : vector<16x64xf32>
    %cst_18 = arith.constant 5.000000e-01 : f32
    %40 = vector.broadcast %cst_18 : f32 to vector<16x64xf32>
    %41 = arith.mulf %40, %39 : vector<16x64xf32>
    %42 = vector.extract_strided_slice %33 {offsets = [0, 64], sizes = [16, 64], strides = [1, 1]} : vector<16x192xf32> to vector<16x64xf32>
    %43 = math.tanh %42 : vector<16x64xf32>
    %44 = vector.extract_strided_slice %33 {offsets = [0, 128], sizes = [16, 64], strides = [1, 1]} : vector<16x192xf32> to vector<16x64xf32>
    %cst_19 = arith.constant 5.000000e-01 : f32
    %45 = vector.broadcast %cst_19 : f32 to vector<16x64xf32>
    %46 = arith.mulf %45, %44 : vector<16x64xf32>
    %47 = math.tanh %46 : vector<16x64xf32>
    %cst_20 = arith.constant 1.000000e+00 : f32
    %48 = vector.broadcast %cst_20 : f32 to vector<16x64xf32>
    %49 = arith.addf %47, %48 : vector<16x64xf32>
    %cst_21 = arith.constant 5.000000e-01 : f32
    %50 = vector.broadcast %cst_21 : f32 to vector<16x64xf32>
    %51 = arith.mulf %50, %49 : vector<16x64xf32>
    %52 = arith.mulf %41, %43 : vector<16x64xf32>
    %53 = math.tanh %52 : vector<16x64xf32>
    %54 = arith.mulf %51, %53 : vector<16x64xf32>
    %c0_22 = arith.constant 0 : index
    %c0_23 = arith.constant 0 : index
    %c0_24 = arith.constant 0 : index
    %55 = vector.load %arg6[%c0_22, %c0_23, %c0_24] : memref<2x16x64xf32, #tpu.memory_space<vmem>>, vector<1x16x64xf32>
    %56 = vector.shape_cast %55 : vector<1x16x64xf32> to vector<16x64xf32>
    %57 = vector.shape_cast %54 : vector<16x64xf32> to vector<1x16x64xf32>
    tpu.vector_store %arg6[%c0_22, %c0_23, %c0_24], %57 {strides = array<i32>} : memref<2x16x64xf32, #tpu.memory_space<vmem>>, vector<1x16x64xf32>,
    %c1 = arith.constant 1 : index
    %c0_25 = arith.constant 0 : index
    %c0_26 = arith.constant 0 : index
    %58 = vector.load %arg6[%c1, %c0_25, %c0_26] : memref<2x16x64xf32, #tpu.memory_space<vmem>>, vector<1x16x64xf32>
    %59 = vector.shape_cast %58 : vector<1x16x64xf32> to vector<16x64xf32>
    %60 = vector.shape_cast %52 : vector<16x64xf32> to vector<1x16x64xf32>
    tpu.vector_store %arg6[%c1, %c0_25, %c0_26], %60 {strides = array<i32>} : memref<2x16x64xf32, #tpu.memory_space<vmem>>, vector<1x16x64xf32>,
    return
  }
  func.func @transform_0(%arg0: i32) -> (i32, i32) {
    %c0_i32 = arith.constant 0 : i32
    %c0_i32_0 = arith.constant 0 : i32
    return %arg0, %c0_i32 : i32, i32
  }
  func.func @transform_1(%arg0: i32) -> (i32, i32) {
    %c0_i32 = arith.constant 0 : i32
    %c0_i32_0 = arith.constant 0 : i32
    %c0_i32_1 = arith.constant 0 : i32
    return %c0_i32, %c0_i32_0 : i32, i32
  }
  func.func @transform_2(%arg0: i32) -> (i32, i32) {
    %c0_i32 = arith.constant 0 : i32
    %c0_i32_0 = arith.constant 0 : i32
    %c0_i32_1 = arith.constant 0 : i32
    return %c0_i32, %c0_i32_0 : i32, i32
  }
  func.func @transform_3(%arg0: i32) -> (i32, i32) {
    %c0_i32 = arith.constant 0 : i32
    %c0_i32_0 = arith.constant 0 : i32
    %c0_i32_1 = arith.constant 0 : i32
    return %c0_i32, %c0_i32_0 : i32, i32
  }
  func.func @transform_4(%arg0: i32) -> (i32, i32) {
    %c0_i32 = arith.constant 0 : i32
    %c0_i32_0 = arith.constant 0 : i32
    %c0_i32_1 = arith.constant 0 : i32
    return %c0_i32, %c0_i32_0 : i32, i32
  }
  func.func @transform_5(%arg0: i32) -> (i32, i32, i32) {
    %c0_i32 = arith.constant 0 : i32
    %c0_i32_0 = arith.constant 0 : i32
    %c0_i32_1 = arith.constant 0 : i32
    return %c0_i32, %arg0, %c0_i32_0 : i32, i32, i32
  }
}

</mosaic_0001>

<llo_original>
// kernel: tpu_custom_call.1
$region0: #{tpu_custom_call.1}
  #allocation0 [shape = 'u32[]', space=smem, size = 0x4, offset = 0x4, fixed_abs, tag = 'smem constant byte address 0x4 - core index']
  #allocation1 [shape = 'u32[144,128]{1,0:T(1,128)}', space=vmem, size = 0x12000, scoped, tag = 'internal scratch']
  %s0 = inlined_call_operand.hbm [shape: f32[16,32], index: 0, kind: input, shape index: {}]
  %s1 = inlined_call_operand.hbm [shape: bf16[32,192], index: 1, kind: input, shape index: {}]
  %s2 = inlined_call_operand.vmem [shape: f32[1,192], index: 2, kind: input, shape index: {}]
  %s3 = inlined_call_operand.hbm [shape: bf16[64,192], index: 3, kind: input, shape index: {}]
  %s4 = inlined_call_operand.vmem [shape: f32[1,192], index: 4, kind: input, shape index: {}]
  %s5 = inlined_call_operand.hbm [shape: f32[2,16,64], index: 5, kind: output, shape index: {}]
  %s6 = sld [smem:[#allocation0]]
  $region42: #{tpu_custom_call.1} parent=0
    _
  %s8 = ssub.s32 1, %s6
  %s9 = scalar_select 0, %s8, %s6
  $region1: #{tpu_custom_call.1} parent=0
    #allocation2 [shape = 'u8[8192]{0}', space=vmem, size = 0x2000, scoped, tag = 'input window, operand 0, single buffered']
    #allocation3 [shape = 's32[1]{0}', space=sflag, size = 0x4, scoped, tag = 'scoped memory for tpu_custom_call.1']
    #allocation4 [shape = 's32[1]{0}', space=sflag, size = 0x4, scoped, tag = 'scoped memory for tpu_custom_call.1']
    #allocation5 [shape = 'u8[16384]{0}', space=vmem, size = 0x4000, scoped, tag = 'input window, operand 1, single buffered']
    #allocation6 [shape = 's32[1]{0}', space=sflag, size = 0x4, scoped, tag = 'scoped memory for tpu_custom_call.1']
    #allocation7 [shape = 'u8[32768]{0}', space=vmem, size = 0x8000, scoped, tag = 'input window, operand 3, single buffered']
    #allocation8 [shape = 'u8[16384]{0}', space=vmem, size = 0x4000, scoped, tag = 'output window, operand 0, single buffered']
    %10 = vsyncpa [#allocation3], 0
    %11 = vsyncpa [#allocation6], 0
    %12 = vsyncpa [#allocation4], 0
    // Predicated region
    $region2: #{tpu_custom_call.1} parent=1 // pred_check
      _
    $region3: #{tpu_custom_call.1} parent=1 // pred_check_branch
      %14 = sbr.rel (0) target = $region5
    $region4: #{tpu_custom_call.1} parent=1 // pred_region
      %s16 = ssub.s32 256, 256
      %17 = vsyncadd [#allocation3], %s16
      %s18 = sshll.u32 [#allocation2], 4
      %s19 = int_to_ptr.vmem [resolvable:$true] %s18
      %24 = dma.hbm_to_vmem [thread:$0]  %s0, 256, %s19, [#allocation3], 128, 128, 8
    $region5: #{tpu_custom_call.1} parent=1 // pred_fallthru
      _
    // Predicated region
    $region6: #{tpu_custom_call.1} parent=1 // pred_check
      _
    $region7: #{tpu_custom_call.1} parent=1 // pred_check_branch
      %26 = sbr.rel (0) target = $region9
    $region8: #{tpu_custom_call.1} parent=1 // pred_region
      %s28 = ssub.s32 512, 512
      %29 = vsyncadd [#allocation6], %s28
      %s30 = sshll.u32 [#allocation5], 4
      %s31 = int_to_ptr.vmem [resolvable:$true] %s30
      %36 = dma.hbm_to_vmem [thread:$0]  %s1, 512, %s31, [#allocation6], 128, 128, 8
    $region9: #{tpu_custom_call.1} parent=1 // pred_fallthru
      _
    // Predicated region
    $region10: #{tpu_custom_call.1} parent=1 // pred_check
      _
    $region11: #{tpu_custom_call.1} parent=1 // pred_check_branch
      %38 = sbr.rel (0) target = $region13
    $region12: #{tpu_custom_call.1} parent=1 // pred_region
      _
    $region13: #{tpu_custom_call.1} parent=1 // pred_fallthru
      _
    // Predicated region
    $region14: #{tpu_custom_call.1} parent=1 // pred_check
      _
    $region15: #{tpu_custom_call.1} parent=1 // pred_check_branch
      %40 = sbr.rel (0) target = $region17
    $region16: #{tpu_custom_call.1} parent=1 // pred_region
      %s42 = ssub.s32 1024, 1024
      %43 = vsyncadd [#allocation6], %s42
      %s44 = sshll.u32 [#allocation7], 4
      %s45 = int_to_ptr.vmem [resolvable:$true] %s44
      %50 = dma.hbm_to_vmem [thread:$0]  %s3, 1024, %s45, [#allocation6], 128, 128, 8
    $region17: #{tpu_custom_call.1} parent=1 // pred_fallthru
      _
    // Predicated region
    $region18: #{tpu_custom_call.1} parent=1 // pred_check
      _
    $region19: #{tpu_custom_call.1} parent=1 // pred_check_branch
      %52 = sbr.rel (0) target = $region21
    $region20: #{tpu_custom_call.1} parent=1 // pred_region
      _
    $region21: #{tpu_custom_call.1} parent=1 // pred_fallthru
      _
    // Predicated region
    $region22: #{tpu_custom_call.1} parent=1 // pred_check
      _
    $region23: #{tpu_custom_call.1} parent=1 // pred_check_branch
      %54 = sbr.rel (0) target = $region25
    $region24: #{tpu_custom_call.1} parent=1 // pred_region
      %55 = dma.done [#allocation3], 256
    $region25: #{tpu_custom_call.1} parent=1 // pred_fallthru
      _
    // Predicated region
    $region26: #{tpu_custom_call.1} parent=1 // pred_check
      _
    $region27: #{tpu_custom_call.1} parent=1 // pred_check_branch
      %57 = sbr.rel (0) target = $region29
    $region28: #{tpu_custom_call.1} parent=1 // pred_region
      %58 = dma.done [#allocation6], 512
    $region29: #{tpu_custom_call.1} parent=1 // pred_fallthru
      _
    // Predicated region
    $region30: #{tpu_custom_call.1} parent=1 // pred_check
      _
    $region31: #{tpu_custom_call.1} parent=1 // pred_check_branch
      %60 = sbr.rel (0) target = $region33
    $region32: #{tpu_custom_call.1} parent=1 // pred_region
      %61 = dma.done [#allocation6], 1024
    $region33: #{tpu_custom_call.1} parent=1 // pred_fallthru
      _
    %v63 = vld [vmem:[#allocation2] sm:$0xff]
    %v64 = vld [vmem:[#allocation2 + $0x8] sm:$0xff]
    %v65 = vpack.c.bf16 %v64, %v63
    %v66 = vld [vmem:[#allocation5] sm:$0xff]
    %v67 = vld [vmem:[#allocation5 + $0x8] sm:$0xff]
    %v68 = vld [vmem:[#allocation5 + $0x10] sm:$0xff]
    %v69 = vld [vmem:[#allocation5 + $0x18] sm:$0xff]
    %v70 = vld [vmem:[%s2] sm:$0x3]
    %v72 = vlaneseq
    %v73 = vshrl.u32 %v72, 7
    %v74 = vsub.s32 0, %v73
    %v75 = vrot.slane %v70, %v74
    %v76 = vlaneseq
    %v77 = vshrl.u32 %v76, 7
    %v78 = vsub.s32 1, %v77
    %v79 = vrot.slane %v70, %v78
    %v86 = vunpack.c.l.b16 %v66
    %v87 = vunpack.c.h.b16 %v66
    %v88 = vunpack.c.l.b16 %v67
    %v89 = vunpack.c.h.b16 %v67
    %v90 = vunpack.c.l.b16 %v68
    %v91 = vunpack.c.h.b16 %v68
    %v92 = vunpack.c.l.b16 %v69
    %v93 = vunpack.c.h.b16 %v69
    %v94 = vpack.c.b16 %v88, %v86
    %v95 = vpack.c.b16 %v89, %v87
    %v96 = vpack.c.b16 %v92, %v90
    %v97 = vpack.c.b16 %v93, %v91
    %vm102 = vcmask 261120
    %v104 = vsel %vm102, %v65, 0
    %106 = vmatprep.subr.bf16.mxu0 %v95
    %107 = vmatpush1.bf16.msra.mxu0 %v94
    %108 = vmatprep.subr.bf16.mxu0 %v97
    %109 = vmatpush1.bf16.msra.mxu0 %v96
    %110 = vmatprep.subr.bf16.mxu0 0
    %111 = vmatpush1.bf16.msra.mxu0 0
    %112 = vmatprep.subr.bf16.mxu0 0
    %113 = vmatpush1.bf16.msra.mxu0 0
    %114 = vmatprep.subr.bf16.mxu0 0
    %115 = vmatpush1.bf16.msra.mxu0 0
    %116 = vmatprep.subr.bf16.mxu0 0
    %117 = vmatpush1.bf16.msra.mxu0 0
    %118 = vmatprep.subr.bf16.mxu0 0
    %119 = vmatpush1.bf16.msra.mxu0 0
    %120 = vmatprep.subr.bf16.mxu0 0
    %121 = vmatpush1.bf16.msra.mxu0 0
    %122 = vmatprep.subr.bf16.mxu0 0
    %123 = vmatpush1.bf16.msra.mxu0 0
    %124 = vmatprep.subr.bf16.mxu0 0
    %125 = vmatpush1.bf16.msra.mxu0 0
    %126 = vmatprep.subr.bf16.mxu0 0
    %127 = vmatpush1.bf16.msra.mxu0 0
    %128 = vmatprep.subr.bf16.mxu0 0
    %129 = vmatpush1.bf16.msra.mxu0 0
    %130 = vmatprep.subr.bf16.mxu0 0
    %131 = vmatpush1.bf16.msra.mxu0 0
    %132 = vmatprep.subr.bf16.mxu0 0
    %133 = vmatpush1.bf16.msra.mxu0 0
    %134 = vmatprep.subr.bf16.mxu0 0
    %135 = vmatpush1.bf16.msra.mxu0 0
    %136 = vmatprep.subr.bf16.mxu0 0
    %137 = vmatpush1.bf16.msra.mxu0 0
    %138 = vmatprep.mubr.bf16.mxu0 0
    %139 = vmatmul.mubr.bf16.gmra.mrb[0].mxu0 %v104
    %v140 = vpop.f32.mrb[0].mxu0
    %v141 = vadd.f32 %v75, %v140
    %v142 = vpop.f32.mrb[0].mxu0
    %v143 = vadd.f32 %v79, %v142
    %v144 = vpop.f32.mrb[0].mxu0
    %v145 = vadd.f32 %v75, %v144
    %v146 = vpop.f32.mrb[0].mxu0
    %v147 = vadd.f32 %v79, %v146
    %148 = vdwg.mxu0
    %v149 = vmul.f32 %v141, 0.5
    %v150 = vmul.f32 %v145, 0.5
    %v151 = vtanh.pop %v149
    %v152 = vtanh.pop %v150
    %v153 = vadd.f32 %v151, 1.0
    %v154 = vadd.f32 %v152, 1.0
    %v155 = vmul.f32 %v153, 0.5
    %v156 = vmul.f32 %v154, 0.5
    %v157 = vtanh.pop %v141
    %v158 = vtanh.pop %v145
    %v159 = vmul.f32 %v143, 0.5
    %v160 = vmul.f32 %v147, 0.5
    %v161 = vtanh.pop %v159
    %v162 = vtanh.pop %v160
    %v163 = vadd.f32 %v161, 1.0
    %v164 = vadd.f32 %v162, 1.0
    %v165 = vmul.f32 %v163, 0.5
    %v166 = vmul.f32 %v164, 0.5
    %169 = vrot.lane.b32.xlu0 %v157, 64
    %v170 = vpop.permute.xlu0 %169
    %171 = vrot.lane.b32.xlu0 %v158, 64
    %v172 = vpop.permute.xlu0 %171
    %v175 = vmul.f32 %v155, %v170
    %v176 = vmul.f32 %v156, %v172
    %v177 = vtanh.pop %v175
    %v178 = vtanh.pop %v176
    %v179 = vmul.f32 %v165, %v177
    %v180 = vmul.f32 %v166, %v178
    %v181 = vpack.c.bf16 %v180, %v179
    %v182 = vld [vmem:[#allocation7] sm:$0xff]
    %v183 = vld [vmem:[#allocation7 + $0x8] sm:$0xff]
    %v184 = vld [vmem:[#allocation7 + $0x10] sm:$0xff]
    %v185 = vld [vmem:[#allocation7 + $0x18] sm:$0xff]
    %v186 = vld [vmem:[#allocation7 + $0x20] sm:$0xff]
    %v187 = vld [vmem:[#allocation7 + $0x28] sm:$0xff]
    %v188 = vld [vmem:[#allocation7 + $0x30] sm:$0xff]
    %v189 = vld [vmem:[#allocation7 + $0x38] sm:$0xff]
    %v190 = vld [vmem:[%s4] sm:$0x3]
    %v192 = vlaneseq
    %v193 = vshrl.u32 %v192, 7
    %v194 = vsub.s32 0, %v193
    %v195 = vrot.slane %v190, %v194
    %v196 = vlaneseq
    %v197 = vshrl.u32 %v196, 7
    %v198 = vsub.s32 1, %v197
    %v199 = vrot.slane %v190, %v198
    %v210 = vunpack.c.l.b16 %v182
    %v211 = vunpack.c.h.b16 %v182
    %v212 = vunpack.c.l.b16 %v183
    %v213 = vunpack.c.h.b16 %v183
    %v214 = vunpack.c.l.b16 %v184
    %v215 = vunpack.c.h.b16 %v184
    %v216 = vunpack.c.l.b16 %v185
    %v217 = vunpack.c.h.b16 %v185
    %v218 = vunpack.c.l.b16 %v186
    %v219 = vunpack.c.h.b16 %v186
    %v220 = vunpack.c.l.b16 %v187
    %v221 = vunpack.c.h.b16 %v187
    %v222 = vunpack.c.l.b16 %v188
    %v223 = vunpack.c.h.b16 %v188
    %v224 = vunpack.c.l.b16 %v189
    %v225 = vunpack.c.h.b16 %v189
    %v226 = vpack.c.b16 %v212, %v210
    %v227 = vpack.c.b16 %v213, %v211
    %v228 = vpack.c.b16 %v216, %v214
    %v229 = vpack.c.b16 %v217, %v215
    %v230 = vpack.c.b16 %v220, %v218
    %v231 = vpack.c.b16 %v221, %v219
    %v232 = vpack.c.b16 %v224, %v222
    %v233 = vpack.c.b16 %v225, %v223
    %vm242 = vcmask 523264
    %v244 = vsel %vm242, %v181, 0
    %246 = vmatprep.subr.bf16.mxu0 %v227
    %247 = vmatpush1.bf16.msra.mxu0 %v226
    %248 = vmatprep.subr.bf16.mxu0 %v229
    %249 = vmatpush1.bf16.msra.mxu0 %v228
    %250 = vmatprep.subr.bf16.mxu0 %v231
    %251 = vmatpush1.bf16.msra.mxu0 %v230
    %252 = vmatprep.subr.bf16.mxu0 %v233
    %253 = vmatpush1.bf16.msra.mxu0 %v232
    %254 = vmatprep.subr.bf16.mxu0 0
    %255 = vmatpush1.bf16.msra.mxu0 0
    %256 = vmatprep.subr.bf16.mxu0 0
    %257 = vmatpush1.bf16.msra.mxu0 0
    %258 = vmatprep.subr.bf16.mxu0 0
    %259 = vmatpush1.bf16.msra.mxu0 0
    %260 = vmatprep.subr.bf16.mxu0 0
    %261 = vmatpush1.bf16.msra.mxu0 0
    %262 = vmatprep.subr.bf16.mxu0 0
    %263 = vmatpush1.bf16.msra.mxu0 0
    %264 = vmatprep.subr.bf16.mxu0 0
    %265 = vmatpush1.bf16.msra.mxu0 0
    %266 = vmatprep.subr.bf16.mxu0 0
    %267 = vmatpush1.bf16.msra.mxu0 0
    %268 = vmatprep.subr.bf16.mxu0 0
    %269 = vmatpush1.bf16.msra.mxu0 0
    %270 = vmatprep.subr.bf16.mxu0 0
    %271 = vmatpush1.bf16.msra.mxu0 0
    %272 = vmatprep.subr.bf16.mxu0 0
    %273 = vmatpush1.bf16.msra.mxu0 0
    %274 = vmatprep.subr.bf16.mxu0 0
    %275 = vmatpush1.bf16.msra.mxu0 0
    %276 = vmatprep.subr.bf16.mxu0 0
    %277 = vmatpush1.bf16.msra.mxu0 0
    %278 = vmatprep.mubr.bf16.mxu0 0
    %279 = vmatmul.mubr.bf16.gmra.mrb[0].mxu0 %v244
    %v280 = vpop.f32.mrb[0].mxu0
    %v281 = vadd.f32 %v195, %v280
    %v282 = vpop.f32.mrb[0].mxu0
    %v283 = vadd.f32 %v199, %v282
    %v284 = vpop.f32.mrb[0].mxu0
    %v285 = vadd.f32 %v195, %v284
    %v286 = vpop.f32.mrb[0].mxu0
    %v287 = vadd.f32 %v199, %v286
    %288 = vdwg.mxu0
    %v289 = vmul.f32 %v281, 0.5
    %v290 = vmul.f32 %v285, 0.5
    %v291 = vtanh.pop %v289
    %v292 = vtanh.pop %v290
    %v293 = vadd.f32 %v291, 1.0
    %v294 = vadd.f32 %v292, 1.0
    %v295 = vmul.f32 %v293, 0.5
    %v296 = vmul.f32 %v294, 0.5
    %v297 = vtanh.pop %v281
    %v298 = vtanh.pop %v285
    %v299 = vmul.f32 %v283, 0.5
    %v300 = vmul.f32 %v287, 0.5
    %v301 = vtanh.pop %v299
    %v302 = vtanh.pop %v300
    %v303 = vadd.f32 %v301, 1.0
    %v304 = vadd.f32 %v302, 1.0
    %v305 = vmul.f32 %v303, 0.5
    %v306 = vmul.f32 %v304, 0.5
    %309 = vrot.lane.b32.xlu0 %v297, 64
    %v310 = vpop.permute.xlu0 %309
    %311 = vrot.lane.b32.xlu0 %v298, 64
    %v312 = vpop.permute.xlu0 %311
    %v315 = vmul.f32 %v295, %v310
    %v316 = vmul.f32 %v296, %v312
    %v317 = vtanh.pop %v315
    %v318 = vtanh.pop %v316
    %v319 = vmul.f32 %v305, %v317
    %v320 = vmul.f32 %v306, %v318
    %321 = vst.msk [vmem:[#allocation8] sm:$0xff] %vm242, %v319
    %322 = vst.msk [vmem:[#allocation8 + $0x8] sm:$0xff] %vm242, %v320
    %s323 = scalar_lea.vmem [#allocation8], 16
    %324 = vst.msk [vmem:[%s323] sm:$0xff] %vm242, %v315
    %325 = vst.msk [vmem:[%s323 + $0x8] sm:$0xff] %vm242, %v316
    // Predicated region
    $region34: #{tpu_custom_call.1} parent=1 // pred_check
      _
    $region35: #{tpu_custom_call.1} parent=1 // pred_check_branch
      %327 = sbr.rel (0) target = $region37
    $region36: #{tpu_custom_call.1} parent=1 // pred_region
      %s329 = ssub.s32 512, 512
      %330 = vsyncadd [#allocation4], %s329
      %s331 = sshll.u32 [#allocation8], 4
      %s332 = int_to_ptr.vmem [resolvable:$true] %s331
      %337 = dma.vmem_to_hbm [thread:$0]  %s332, 512, %s5, [#allocation4], 128, 128, 8
    $region37: #{tpu_custom_call.1} parent=1 // pred_fallthru
      _
    // Predicated region
    $region38: #{tpu_custom_call.1} parent=1 // pred_check
      _
    $region39: #{tpu_custom_call.1} parent=1 // pred_check_branch
      %339 = sbr.rel (0) target = $region41
    $region40: #{tpu_custom_call.1} parent=1 // pred_region
      %340 = dma.done [#allocation4], 512
    $region41: #{tpu_custom_call.1} parent=1 // pred_fallthru
      _
    %341 = vsyncpa [#allocation3], 1
    %342 = vsyncpa [#allocation6], 1
    %343 = vsyncpa [#allocation4], 1

</llo_original>
